<compile_context>
chip_gen: v5e
topology: v5e:2x2
jax: 0.10.0
libtpu: 0.0.40
codegen_flags: <defaults>
</compile_context>

<pallas_src>
import math

import jax
import jax.numpy as jnp
from jax.experimental import pallas as pl
from jax.experimental.pallas import tpu as pltpu


def _round_up(x: int, m: int) -> int:
    return ((x + m - 1) // m) * m


def _cdiv(a: int, b: int) -> int:
    return -(-a // b)


def _choose_tb(B: int, block_b: int) -> int:
    """Batch tile: multiple of 16 (bf16 sublane packing), <= block_b, and sized
    so the grid has >= 2 steps once the batch is big enough (v7x megacore)
    while keeping the ragged last tile small."""
    if B <= 32:
        return 16
    half = _cdiv(B, 2)  # aim for at least 2 grid steps
    tb = min(block_b, _round_up(half, 16))
    return max(16, tb)


def fused_mlp_kernel(x_ref, w_ref, b_ref, o_ref):
    # x_ref: [TB, D] (input dtype)   w_ref: [D, Op] bf16
    # b_ref: [1, Op] f32             o_ref: [TB, Op] bf16
    x = x_ref[...].astype(jnp.bfloat16)  # no-op when the producer already emits bf16
    y = jnp.dot(x, w_ref[...], preferred_element_type=jnp.float32) + b_ref[...]
    o_ref[...] = y.astype(o_ref.dtype)


def fashion_mnist_model_v0(x_nchw, w1, b1, w2, b2, *, block_b: int | None = None):
    """Forward pass of FashionMNISTModelv0.

    x_nchw: [B, C, H, W] float32 or bfloat16 (bf16 recommended: halves x HBM read)
    w1:     [D, hidden]  (D = C*H*W), b1: [hidden]   (note: [in, out] layout,
    w2:     [hidden, out], b2: [out]                  transposed vs nn.Linear)
    returns [B, out] float32
    """
    B = x_nchw.shape[0]
    D = math.prod(x_nchw.shape[1:])
    H = w1.shape[1]
    O = w2.shape[1]
    assert w1.shape[0] == D and w2.shape[0] == H and b1.shape == (H,) and b2.shape == (O,)

    Op = _round_up(O, 128)  # lane-dense padded output dim (10 -> exactly 128)

    if block_b is None:
        # bf16 x tiles are half the bytes -> bigger tiles still fit the v5e
        # 16 MiB default scoped-VMEM budget; f32 inputs cap at 1024 rows.
        block_b = 2048 if x_nchw.dtype == jnp.bfloat16 else 1024
    TB = _choose_tb(B, block_b)
    grid = (_cdiv(B, TB),)

    # nn.Flatten(): free metadata reshape -- x is NOT copied or padded.
    x_flat = x_nchw.reshape(B, D)

    # Algebraic fusion of the two Linears (exact up to f32 rounding order):
    #   y = (x @ W1 + b1) @ W2 + b2 = x @ (W1 @ W2) + (b1 @ W2 + b2)
    w1f, w2f = w1.astype(jnp.float32), w2.astype(jnp.float32)
    b1f, b2f = b1.astype(jnp.float32), b2.astype(jnp.float32)
    w_fused = w1f @ w2f                                    # [D, O] f32
    b_fused = b1f @ w2f + b2f                              # [O]    f32
    w_p = jnp.pad(w_fused, ((0, 0), (0, Op - O))).astype(jnp.bfloat16)  # [D, Op]
    b_p = jnp.pad(b_fused, (0, Op - O)).reshape(1, Op)                  # [1, Op] f32

    x_bytes = B * D * jnp.dtype(x_flat.dtype).itemsize
    cost = pl.CostEstimate(
        flops=2 * B * D * Op,
        transcendentals=0,
        bytes_accessed=x_bytes + D * Op * 2 + Op * 4 + B * Op * 2,
    )

    out_p = pl.pallas_call(
        fused_mlp_kernel,
        out_shape=jax.ShapeDtypeStruct((B, Op), jnp.bfloat16),
        grid=grid,
        in_specs=[
            # Batch-tiled activations: last block dim == full feature dim D
            # (no feature padding); double-buffered by the pipeline.
            pl.BlockSpec((TB, D), lambda i: (i, 0)),
            # Fused weight / bias: constant block index -> VMEM-resident.
            pl.BlockSpec((D, Op), lambda i: (0, 0)),
            pl.BlockSpec((1, Op), lambda i: (0, 0)),
        ],
        out_specs=pl.BlockSpec((TB, Op), lambda i: (i, 0)),
        compiler_params=pltpu.CompilerParams(
            # Independent batch tiles -> megacore-shardable on v7x.
            dimension_semantics=("parallel",),
        ),
        cost_estimate=cost,
    )(x_flat, w_p, b_p)

    # Strip the all-zero padded logit columns; return f32 like the reference module.
    return out_p[:, :O].astype(jnp.float32)


def init_params(key, in_features, hidden_units, out_features):
    """Deterministic nn.Linear-style init (uniform +/- 1/sqrt(fan_in))."""
    k1, k2, k3, k4 = jax.random.split(key, 4)
    bound1 = 1.0 / math.sqrt(in_features)
    bound2 = 1.0 / math.sqrt(hidden_units)
    w1 = jax.random.uniform(k1, (in_features, hidden_units), jnp.float32,
                            -bound1, bound1)
    b1 = jax.random.uniform(k2, (hidden_units,), jnp.float32, -bound1, bound1)
    w2 = jax.random.uniform(k3, (hidden_units, out_features), jnp.float32,
                            -bound2, bound2)
    b2 = jax.random.uniform(k4, (out_features,), jnp.float32, -bound2, bound2)
    return w1, b1, w2, b2


if __name__ == "__main__":
    # Real FashionMNISTModelv0 config at a small batch: 1x28x28 images,
    # input_shape = 784, hidden_units = 10, output_shape = 10.
    # B=32 -> TB=16 -> grid=(2,), exercising the batch pipeline / megacore path.
    B, C, Himg, Wimg = 32, 1, 28, 28
    IN_FEATURES = C * Himg * Wimg
    HIDDEN = 10
    OUT = 10

    key = jax.random.PRNGKey(0)
    kx, kp = jax.random.split(key)
    # Cast to bf16 at the producer (per review): halves the dominant x HBM read.
    x = jax.random.normal(kx, (B, C, Himg, Wimg), jnp.float32).astype(jnp.bfloat16)
    w1, b1, w2, b2 = init_params(kp, IN_FEATURES, HIDDEN, OUT)

    y = fashion_mnist_model_v0(x, w1, b1, w2, b2)
    y = jax.block_until_ready(y)

    # Pure-JAX f32 reference; tolerance loosened for bf16 weights/activations
    # and the fused-weight rounding reorder.
    x_flat = x.astype(jnp.float32).reshape(B, -1)
    y_ref = (x_flat @ w1 + b1) @ w2 + b2
    assert y.shape == (B, OUT)
    assert y.dtype == jnp.float32
    assert jnp.allclose(y, y_ref, atol=2e-2, rtol=2e-2)

    print("KERNEL_OK")
</pallas_src>

<mosaic_0001>
module attributes {stable_mosaic.version = 11 : i64} {
  func.func @fused_mlp_kernel(%arg0: i32, %arg1: memref<16x784xbf16, #tpu.memory_space<vmem>>, %arg2: memref<784x128xbf16, #tpu.memory_space<vmem>>, %arg3: memref<1x128xf32, #tpu.memory_space<vmem>>, %arg4: memref<16x128xbf16, #tpu.memory_space<vmem>>) attributes {dimension_semantics = [#tpu.dimension_semantics<parallel>], iteration_bounds = array<i64: 2>, scalar_prefetch = 0 : i64, scratch_operands = 0 : i64, tpu.core_type = #tpu.core_type<tc>, window_params = [{transform_indices = @transform_0, window_bounds = array<i64: 16, 784>}, {pipeline_mode = #tpu.pipeline_mode<synchronous>, transform_indices = @transform_1, window_bounds = array<i64: 784, 128>}, {pipeline_mode = #tpu.pipeline_mode<synchronous>, transform_indices = @transform_2, window_bounds = array<i64: 1, 128>}, {transform_indices = @transform_3, window_bounds = array<i64: 16, 128>}]} {
    %c0 = arith.constant 0 : index
    %c0_0 = arith.constant 0 : index
    %0 = vector.load %arg1[%c0, %c0_0] : memref<16x784xbf16, #tpu.memory_space<vmem>>, vector<16x784xbf16>
    %c0_1 = arith.constant 0 : index
    %c0_2 = arith.constant 0 : index
    %1 = vector.load %arg2[%c0_1, %c0_2] : memref<784x128xbf16, #tpu.memory_space<vmem>>, vector<784x128xbf16>
    %cst = arith.constant dense<0.000000e+00> : vector<16x128xf32>
    %2 = tpu.matmul %0, %1, %cst {dimension_numbers = #tpu.dot_dimension_numbers<[1], [0], [0], [1], [0, 0, 1, 1], [], []>} : vector<16x784xbf16>, vector<784x128xbf16>, vector<16x128xf32> -> vector<16x128xf32>
    %c0_3 = arith.constant 0 : index
    %c0_4 = arith.constant 0 : index
    %3 = vector.load %arg3[%c0_3, %c0_4] : memref<1x128xf32, #tpu.memory_space<vmem>>, vector<1x128xf32>
    %4 = vector.broadcast %3 : vector<1x128xf32> to vector<16x128xf32>
    %5 = arith.addf %2, %4 : vector<16x128xf32>
    %6 = arith.truncf %5 : vector<16x128xf32> to vector<16x128xbf16>
    %c0_5 = arith.constant 0 : index
    %c0_6 = arith.constant 0 : index
    %7 = vector.load %arg4[%c0_5, %c0_6] : memref<16x128xbf16, #tpu.memory_space<vmem>>, vector<16x128xbf16>
    tpu.vector_store %arg4[%c0_5, %c0_6], %6 {strides = array<i32>} : memref<16x128xbf16, #tpu.memory_space<vmem>>, vector<16x128xbf16>,
    return
  }
  func.func @transform_0(%arg0: i32) -> (i32, i32) {
    %c0_i32 = arith.constant 0 : i32
    %c0_i32_0 = arith.constant 0 : i32
    return %arg0, %c0_i32 : i32, i32
  }
  func.func @transform_1(%arg0: i32) -> (i32, i32) {
    %c0_i32 = arith.constant 0 : i32
    %c0_i32_0 = arith.constant 0 : i32
    %c0_i32_1 = arith.constant 0 : i32
    return %c0_i32, %c0_i32_0 : i32, i32
  }
  func.func @transform_2(%arg0: i32) -> (i32, i32) {
    %c0_i32 = arith.constant 0 : i32
    %c0_i32_0 = arith.constant 0 : i32
    %c0_i32_1 = arith.constant 0 : i32
    return %c0_i32, %c0_i32_0 : i32, i32
  }
  func.func @transform_3(%arg0: i32) -> (i32, i32) {
    %c0_i32 = arith.constant 0 : i32
    %c0_i32_0 = arith.constant 0 : i32
    return %arg0, %c0_i32 : i32, i32
  }
}

</mosaic_0001>

<llo_original>
// kernel: tpu_custom_call.1
$region0: #{tpu_custom_call.1}
  #allocation0 [shape = 'u32[]', space=smem, size = 0x4, offset = 0x4, fixed_abs, tag = 'smem constant byte address 0x4 - core index']
  #allocation1 [shape = 'u32[72,128]{1,0:T(1,128)}', space=vmem, size = 0x9000, scoped, tag = 'internal scratch']
  %s0 = inlined_call_operand.hbm [shape: bf16[32,784], index: 0, kind: input, shape index: {}]
  %s1 = inlined_call_operand.hbm [shape: bf16[784,128], index: 1, kind: input, shape index: {}]
  %s2 = inlined_call_operand.vmem [shape: f32[1,128], index: 2, kind: input, shape index: {}]
  %s3 = inlined_call_operand.hbm [shape: bf16[32,128], index: 3, kind: output, shape index: {}]
  %s4 = sld [smem:[#allocation0]]
  $region53: #{tpu_custom_call.1} parent=0
    _
  %s6 = ssub.s32 1, %s4
  %s7 = scalar_select 0, %s6, %s4
  $region1: #{tpu_custom_call.1} parent=0
    #allocation2 [shape = 'u8[57344]{0}', space=vmem, size = 0xe000, scoped, tag = 'input window, operand 0']
    #allocation3 [shape = 's32[2]{0}', space=sflag, size = 0x8, scoped, tag = 'scoped memory for tpu_custom_call.1']
    #allocation4 [shape = 's32[2]{0}', space=sflag, size = 0x8, scoped, tag = 'scoped memory for tpu_custom_call.1']
    #allocation5 [shape = 'u8[200704]{0}', space=vmem, size = 0x31000, scoped, tag = 'input window, operand 1, single buffered']
    #allocation6 [shape = 's32[1]{0}', space=sflag, size = 0x4, scoped, tag = 'scoped memory for tpu_custom_call.1']
    #allocation7 [shape = 'u8[8192]{0}', space=vmem, size = 0x2000, scoped, tag = 'output window, operand 0']
    %8 = vsyncpa [#allocation3], 0
    %s9 = scalar_lea.sflag [#allocation3], 1
    %10 = vsyncpa %s9, 0
    %11 = vsyncpa [#allocation6], 0
    %12 = vsyncpa [#allocation4], 0
    %s13 = scalar_lea.sflag [#allocation4], 1
    %14 = vsyncpa %s13, 0
    loop: start=0, step=1, limit=4
    $region2: #{tpu_custom_call.1} parent=1 // loop_pre_header
      _
    $region3: #{tpu_custom_call.1} parent=1 // loop_header
      %s16 = sphi 0, %s20
      %p17 = scmp.ge.s32.totalorder %s16, 4
      %s26 = sphi 0, %s28
      %s29 = sphi 0, %s26
      %s30 = sphi 0, %s29
      %s46 = sphi 0, %s30
      %s50 = sphi 0, %s50
      %s52 = sphi 0, %s50
      %s53 = sphi 0, %s52
      %s67 = sphi 0, %s53
      %s71 = sphi 0, %s71
      %s73 = sphi 0, %s71
      %s74 = sphi 0, %s73
      %s88 = sphi 0, %s74
      %s94 = sphi 0, %s96
      %s97 = sphi 0, %s94
      %s98 = sphi 0, %s97
      %s114 = sphi 0, %s98
    $region4: #{tpu_custom_call.1} parent=1 // loop_header_branch
      %19 = sbr.rel (%p17) target = $region8
    $region5: #{tpu_custom_call.1} parent=1 // loop_body
      %s21 = ssub.s32 %s16, 1
      %s22 = ssub.s32 %s16, 2
      %s23 = sadd.s32 %s16, 1
      %s24 = ssub.s32 %s16, %s23
      %p25 = scmp.eq.s32.totalorder %s24, 0
      %s27 = sadd.s32 %s26, 1
      %s28 = scalar_select %p25, %s26, %s27
      %p31 = pneg %p25
      %p32 = scmp.eq.s32.totalorder %s16, 1
      %p33 = por %p31, %p32
      %p34 = scmp.ne.s32.totalorder %s26, %s29
      %p35 = scmp.eq.s32.totalorder %s16, 0
      %p36 = por %p34, %p35
      %p37 = scmp.ne.s32.totalorder %s26, %s29
      %p38 = scmp.eq.s32.totalorder %s21, 1
      %p39 = por %p37, %p38
      %p40 = scmp.ne.s32.totalorder %s29, %s30
      %p41 = scmp.eq.s32.totalorder %s21, 0
      %p42 = por %p40, %p41
      %p43 = scmp.ne.s32.totalorder %s29, %s30
      %p44 = scmp.eq.s32.totalorder %s22, 1
      %p45 = por %p43, %p44
      %p47 = scmp.ne.s32.totalorder %s30, %s46
      %p48 = scmp.eq.s32.totalorder %s22, 0
      %p49 = por %p47, %p48
      %s51 = sadd.s32 %s50, 1
      %p54 = scmp.eq.s32.totalorder %s16, 1
      %p55 = scmp.ne.s32.totalorder %s50, %s52
      %p56 = scmp.eq.s32.totalorder %s16, 0
      %p57 = por %p55, %p56
      %p58 = scmp.ne.s32.totalorder %s50, %s52
      %p59 = scmp.eq.s32.totalorder %s21, 1
      %p60 = por %p58, %p59
      %p61 = scmp.ne.s32.totalorder %s52, %s53
      %p62 = scmp.eq.s32.totalorder %s21, 0
      %p63 = por %p61, %p62
      %p64 = scmp.ne.s32.totalorder %s52, %s53
      %p65 = scmp.eq.s32.totalorder %s22, 1
      %p66 = por %p64, %p65
      %p68 = scmp.ne.s32.totalorder %s53, %s67
      %p69 = scmp.eq.s32.totalorder %s22, 0
      %p70 = por %p68, %p69
      %s72 = sadd.s32 %s71, 1
      %p75 = scmp.eq.s32.totalorder %s16, 1
      %p76 = scmp.ne.s32.totalorder %s71, %s73
      %p77 = scmp.eq.s32.totalorder %s16, 0
      %p78 = por %p76, %p77
      %p79 = scmp.ne.s32.totalorder %s71, %s73
      %p80 = scmp.eq.s32.totalorder %s21, 1
      %p81 = por %p79, %p80
      %p82 = scmp.ne.s32.totalorder %s73, %s74
      %p83 = scmp.eq.s32.totalorder %s21, 0
      %p84 = por %p82, %p83
      %p85 = scmp.ne.s32.totalorder %s73, %s74
      %p86 = scmp.eq.s32.totalorder %s22, 1
      %p87 = por %p85, %p86
      %p89 = scmp.ne.s32.totalorder %s74, %s88
      %p90 = scmp.eq.s32.totalorder %s22, 0
      %p91 = por %p89, %p90
      %s92 = ssub.s32 %s16, %s23
      %p93 = scmp.eq.s32.totalorder %s92, 0
      %s95 = sadd.s32 %s94, 1
      %s96 = scalar_select %p93, %s94, %s95
      %p99 = pneg %p93
      %p100 = scmp.eq.s32.totalorder %s16, 1
      %p101 = por %p99, %p100
      %p102 = scmp.ne.s32.totalorder %s94, %s97
      %p103 = scmp.eq.s32.totalorder %s16, 0
      %p104 = por %p102, %p103
      %p105 = scmp.ne.s32.totalorder %s94, %s97
      %p106 = scmp.eq.s32.totalorder %s21, 1
      %p107 = por %p105, %p106
      %p108 = scmp.ne.s32.totalorder %s97, %s98
      %p109 = scmp.eq.s32.totalorder %s21, 0
      %p110 = por %p108, %p109
      %p111 = scmp.ne.s32.totalorder %s97, %s98
      %p112 = scmp.eq.s32.totalorder %s22, 1
      %p113 = por %p111, %p112
      %p115 = scmp.ne.s32.totalorder %s98, %s114
      %p116 = scmp.eq.s32.totalorder %s22, 0
      %p117 = por %p115, %p116
      %p118 = scmp.le.s32.totalorder 1, %s16
      %p119 = scmp.lt.s32.totalorder %s16, 3
      %p120 = pnand %p118, %p119
      %p121 = pneg %p120
      // Predicated region
      $region9: #{tpu_custom_call.1} parent=5 // pred_check
        _
      $region10: #{tpu_custom_call.1} parent=5 // pred_check_branch
        %123 = sbr.rel (%p120) target = $region12
      $region11: #{tpu_custom_call.1} parent=5 // pred_region
        %s124 = ssub.s32 %s16, 1
        // Predicated region
        $region13: #{tpu_custom_call.1} parent=11 // pred_check
          %p125 = pneg %p63
        $region14: #{tpu_custom_call.1} parent=11 // pred_check_branch
          %127 = sbr.rel (%p125) target = $region16
        $region15: #{tpu_custom_call.1} parent=11 // pred_region
          %129 = vsyncadd [#allocation6], 0
          %s130 = sshll.u32 %s1, 4
          %s131 = int_to_ptr.hbm [resolvable:$true] %s130
          %s132 = sshll.u32 [#allocation5], 4
          %s133 = int_to_ptr.vmem [resolvable:$true] %s132
          %138 = dma.hbm_to_vmem [thread:$0]  %s131, 6272, %s133, [#allocation6], 64, 64, 4
        $region16: #{tpu_custom_call.1} parent=11 // pred_fallthru
          _
        // Predicated region
        $region17: #{tpu_custom_call.1} parent=11 // pred_check
          %p139 = pneg %p84
        $region18: #{tpu_custom_call.1} parent=11 // pred_check_branch
          %141 = sbr.rel (%p139) target = $region20
        $region19: #{tpu_custom_call.1} parent=11 // pred_region
          _
        $region20: #{tpu_custom_call.1} parent=11 // pred_fallthru
          _
      $region12: #{tpu_custom_call.1} parent=5 // pred_fallthru
        _
      %p142 = scmp.lt.s32.totalorder %s16, 2
      // Predicated region
      $region21: #{tpu_custom_call.1} parent=5 // pred_check
        %p143 = pneg %p142
      $region22: #{tpu_custom_call.1} parent=5 // pred_check_branch
        %145 = sbr.rel (%p143) target = $region24
      $region23: #{tpu_custom_call.1} parent=5 // pred_region
        // Predicated region
        $region25: #{tpu_custom_call.1} parent=23 // pred_check
          %p146 = pneg %p36
        $region26: #{tpu_custom_call.1} parent=23 // pred_check_branch
          %148 = sbr.rel (%p146) target = $region28
        $region27: #{tpu_custom_call.1} parent=23 // pred_region
          %s149 = sand.u32 %s26, 1
          %s150 = scalar_lea.sflag [#allocation3], %s149
          %s151 = sand.u32 %s26, 1
          %s152 = smul.addr %s151, 56
          %s153 = scalar_lea.vmem [#allocation2], %s152
          %s154 = smul.u32 2, %s16
          %156 = vsyncadd %s150, 0
          %s157 = smul.addr %s154, 7
          %s158 = smul.addr %s157, 4
          %s159 = scalar_lea.hbm %s0, %s158
          %s160 = sshll.u32 %s159, 4
          %s161 = int_to_ptr.hbm [resolvable:$true] %s160
          %s162 = sshll.u32 %s153, 4
          %s163 = int_to_ptr.vmem [resolvable:$true] %s162
          %168 = dma.hbm_to_vmem [thread:$0]  %s161, 896, %s163, %s150, 448, 448, 28
        $region28: #{tpu_custom_call.1} parent=23 // pred_fallthru
          _
      $region24: #{tpu_custom_call.1} parent=5 // pred_fallthru
        _
      %p169 = scmp.le.s32.totalorder 1, %s16
      %p170 = scmp.lt.s32.totalorder %s16, 3
      %p171 = pnand %p169, %p170
      %p172 = pneg %p171
      // Predicated region
      $region29: #{tpu_custom_call.1} parent=5 // pred_check
        _
      $region30: #{tpu_custom_call.1} parent=5 // pred_check_branch
        %174 = sbr.rel (%p171) target = $region32
      $region31: #{tpu_custom_call.1} parent=5 // pred_region
        %s175 = ssub.s32 %s16, 1
        %s176 = sand.u32 %s29, 1
        %s177 = scalar_lea.sflag [#allocation3], %s176
        %s178 = sand.u32 %s29, 1
        %s179 = smul.addr %s178, 56
        %s180 = scalar_lea.vmem [#allocation2], %s179
        // Predicated region
        $region33: #{tpu_custom_call.1} parent=31 // pred_check
          %p181 = pneg %p42
        $region34: #{tpu_custom_call.1} parent=31 // pred_check_branch
          %183 = sbr.rel (%p181) target = $region36
        $region35: #{tpu_custom_call.1} parent=31 // pred_region
          %185 = dma.done %s177, 896
        $region36: #{tpu_custom_call.1} parent=31 // pred_fallthru
          _
        // Predicated region
        $region37: #{tpu_custom_call.1} parent=31 // pred_check
          %p186 = pneg %p63
        $region38: #{tpu_custom_call.1} parent=31 // pred_check_branch
          %188 = sbr.rel (%p186) target = $region40
        $region39: #{tpu_custom_call.1} parent=31 // pred_region
          %190 = dma.done [#allocation6], 6272
        $region40: #{tpu_custom_call.1} parent=31 // pred_fallthru
          _
        %s191 = sand.u32 %s29, 1
        %s192 = scalar_lea.sflag [#allocation3], %s191
        %s193 = sand.u32 %s29, 1
        %s194 = smul.addr %s193, 56
        %s195 = scalar_lea.vmem [#allocation2], %s194
        %p196 = pneg %p42
        %p197 = pneg %p39
        %p198 = pneg %p63
        %p199 = pneg %p60
        %p200 = pneg %p84
        %p201 = pneg %p81
        %p202 = pneg %p110
        %p203 = pneg %p107
        %s204 = sand.u32 %s97, 1
        %s205 = scalar_lea.sflag [#allocation4], %s204
        %s206 = sand.u32 %s97, 1
        %s207 = smul.addr %s206, 8
        %s208 = scalar_lea.vmem [#allocation7], %s207
        %s209 = smul.u32 2, %s21
        %s210 = smul.u32 2, %s21
        %v212 = vld [vmem:[%s180] sm:$0xff]
        %v213 = vld [vmem:[%s180 + $0x8] sm:$0xff]
        %v214 = vld [vmem:[%s180 + $0x10] sm:$0xff]
        %v215 = vld [vmem:[%s180 + $0x18] sm:$0xf]
        %v216 = vld [vmem:[%s180 + $0x1c] sm:$0xff]
        %v217 = vld [vmem:[%s180 + $0x24] sm:$0xff]
        %v218 = vld [vmem:[%s180 + $0x2c] sm:$0xff]
        %v219 = vld [vmem:[%s180 + $0x34] sm:$0xf]
        %v220 = vld [vmem:[#allocation5] sm:$0xf]
        %v221 = vld [vmem:[#allocation5 + $0x4] sm:$0xf]
        %v222 = vld [vmem:[#allocation5 + $0x8] sm:$0xf]
        %v223 = vld [vmem:[#allocation5 + $0xc] sm:$0xf]
        %v224 = vld [vmem:[#allocation5 + $0x10] sm:$0xf]
        %v225 = vld [vmem:[#allocation5 + $0x14] sm:$0xf]
        %v226 = vld [vmem:[#allocation5 + $0x18] sm:$0xf]
        %v227 = vld [vmem:[#allocation5 + $0x1c] sm:$0xf]
        %v228 = vld [vmem:[#allocation5 + $0x20] sm:$0xf]
        %v229 = vld [vmem:[#allocation5 + $0x24] sm:$0xf]
        %v230 = vld [vmem:[#allocation5 + $0x28] sm:$0xf]
        %v231 = vld [vmem:[#allocation5 + $0x2c] sm:$0xf]
        %v232 = vld [vmem:[#allocation5 + $0x30] sm:$0xf]
        %v233 = vld [vmem:[#allocation5 + $0x34] sm:$0xf]
        %v234 = vld [vmem:[#allocation5 + $0x38] sm:$0xf]
        %v235 = vld [vmem:[#allocation5 + $0x3c] sm:$0xf]
        %v236 = vld [vmem:[#allocation5 + $0x40] sm:$0xf]
        %v237 = vld [vmem:[#allocation5 + $0x44] sm:$0xf]
        %v238 = vld [vmem:[#allocation5 + $0x48] sm:$0xf]
        %v239 = vld [vmem:[#allocation5 + $0x4c] sm:$0xf]
        %v240 = vld [vmem:[#allocation5 + $0x50] sm:$0xf]
        %v241 = vld [vmem:[#allocation5 + $0x54] sm:$0xf]
        %v242 = vld [vmem:[#allocation5 + $0x58] sm:$0xf]
        %v243 = vld [vmem:[#allocation5 + $0x5c] sm:$0xf]
        %v244 = vld [vmem:[#allocation5 + $0x60] sm:$0xf]
        %v245 = vld [vmem:[#allocation5 + $0x64] sm:$0xf]
        %v246 = vld [vmem:[#allocation5 + $0x68] sm:$0xf]
        %v247 = vld [vmem:[#allocation5 + $0x6c] sm:$0xf]
        %v248 = vld [vmem:[#allocation5 + $0x70] sm:$0xf]
        %v249 = vld [vmem:[#allocation5 + $0x74] sm:$0xf]
        %v250 = vld [vmem:[#allocation5 + $0x78] sm:$0xf]
        %v251 = vld [vmem:[#allocation5 + $0x7c] sm:$0xf]
        %v252 = vld [vmem:[#allocation5 + $0x80] sm:$0xf]
        %v253 = vld [vmem:[#allocation5 + $0x84] sm:$0xf]
        %v254 = vld [vmem:[#allocation5 + $0x88] sm:$0xf]
        %v255 = vld [vmem:[#allocation5 + $0x8c] sm:$0xf]
        %v256 = vld [vmem:[#allocation5 + $0x90] sm:$0xf]
        %v257 = vld [vmem:[#allocation5 + $0x94] sm:$0xf]
        %v258 = vld [vmem:[#allocation5 + $0x98] sm:$0xf]
        %v259 = vld [vmem:[#allocation5 + $0x9c] sm:$0xf]
        %v260 = vld [vmem:[#allocation5 + $0xa0] sm:$0xf]
        %v261 = vld [vmem:[#allocation5 + $0xa4] sm:$0xf]
        %v262 = vld [vmem:[#allocation5 + $0xa8] sm:$0xf]
        %v263 = vld [vmem:[#allocation5 + $0xac] sm:$0xf]
        %v264 = vld [vmem:[#allocation5 + $0xb0] sm:$0xf]
        %v265 = vld [vmem:[#allocation5 + $0xb4] sm:$0xf]
        %v266 = vld [vmem:[#allocation5 + $0xb8] sm:$0xf]
        %v267 = vld [vmem:[#allocation5 + $0xbc] sm:$0xf]
        %v268 = vld [vmem:[#allocation5 + $0xc0] sm:$0xf]
        %v269 = vld [vmem:[#allocation5 + $0xc4] sm:$0xf]
        %v270 = vld [vmem:[#allocation5 + $0xc8] sm:$0xf]
        %v271 = vld [vmem:[#allocation5 + $0xcc] sm:$0xf]
        %v272 = vld [vmem:[#allocation5 + $0xd0] sm:$0xf]
        %v273 = vld [vmem:[#allocation5 + $0xd4] sm:$0xf]
        %v274 = vld [vmem:[#allocation5 + $0xd8] sm:$0xf]
        %v275 = vld [vmem:[#allocation5 + $0xdc] sm:$0xf]
        %v276 = vld [vmem:[#allocation5 + $0xe0] sm:$0xf]
        %v277 = vld [vmem:[#allocation5 + $0xe4] sm:$0xf]
        %v278 = vld [vmem:[#allocation5 + $0xe8] sm:$0xf]
        %v279 = vld [vmem:[#allocation5 + $0xec] sm:$0xf]
        %v280 = vld [vmem:[#allocation5 + $0xf0] sm:$0xf]
        %v281 = vld [vmem:[#allocation5 + $0xf4] sm:$0xf]
        %v282 = vld [vmem:[#allocation5 + $0xf8] sm:$0xf]
        %v283 = vld [vmem:[#allocation5 + $0xfc] sm:$0xf]
        %v284 = vld [vmem:[#allocation5 + $0x100] sm:$0xf]
        %v285 = vld [vmem:[#allocation5 + $0x104] sm:$0xf]
        %v286 = vld [vmem:[#allocation5 + $0x108] sm:$0xf]
        %v287 = vld [vmem:[#allocation5 + $0x10c] sm:$0xf]
        %v288 = vld [vmem:[#allocation5 + $0x110] sm:$0xf]
        %v289 = vld [vmem:[#allocation5 + $0x114] sm:$0xf]
        %v290 = vld [vmem:[#allocation5 + $0x118] sm:$0xf]
        %v291 = vld [vmem:[#allocation5 + $0x11c] sm:$0xf]
        %v292 = vld [vmem:[#allocation5 + $0x120] sm:$0xf]
        %v293 = vld [vmem:[#allocation5 + $0x124] sm:$0xf]
        %v294 = vld [vmem:[#allocation5 + $0x128] sm:$0xf]
        %v295 = vld [vmem:[#allocation5 + $0x12c] sm:$0xf]
        %v296 = vld [vmem:[#allocation5 + $0x130] sm:$0xf]
        %v297 = vld [vmem:[#allocation5 + $0x134] sm:$0xf]
        %v298 = vld [vmem:[#allocation5 + $0x138] sm:$0xf]
        %v299 = vld [vmem:[#allocation5 + $0x13c] sm:$0xf]
        %v300 = vld [vmem:[#allocation5 + $0x140] sm:$0xf]
        %v301 = vld [vmem:[#allocation5 + $0x144] sm:$0xf]
        %v302 = vld [vmem:[#allocation5 + $0x148] sm:$0xf]
        %v303 = vld [vmem:[#allocation5 + $0x14c] sm:$0xf]
        %v304 = vld [vmem:[#allocation5 + $0x150] sm:$0xf]
        %v305 = vld [vmem:[#allocation5 + $0x154] sm:$0xf]
        %v306 = vld [vmem:[#allocation5 + $0x158] sm:$0xf]
        %v307 = vld [vmem:[#allocation5 + $0x15c] sm:$0xf]
        %v308 = vld [vmem:[#allocation5 + $0x160] sm:$0xf]
        %v309 = vld [vmem:[#allocation5 + $0x164] sm:$0xf]
        %v310 = vld [vmem:[#allocation5 + $0x168] sm:$0xf]
        %v311 = vld [vmem:[#allocation5 + $0x16c] sm:$0xf]
        %v312 = vld [vmem:[#allocation5 + $0x170] sm:$0xf]
        %v313 = vld [vmem:[#allocation5 + $0x174] sm:$0xf]
        %v314 = vld [vmem:[#allocation5 + $0x178] sm:$0xf]
        %v315 = vld [vmem:[#allocation5 + $0x17c] sm:$0xf]
        %v316 = vld [vmem:[#allocation5 + $0x180] sm:$0xf]
        %v317 = vld [vmem:[#allocation5 + $0x184] sm:$0xf]
        %v318 = vld [vmem:[%s2] sm:$0x1]
        %v320 = vperm.slane %v318, 0
        %v330 = vunpack.c.l.b16 %v212
        %v331 = vunpack.c.h.b16 %v212
        %v332 = vunpack.c.l.b16 %v213
        %v333 = vunpack.c.h.b16 %v213
        %v334 = vunpack.c.l.b16 %v214
        %v335 = vunpack.c.h.b16 %v214
        %v336 = vunpack.c.l.b16 %v215
        %v337 = vunpack.c.l.b16 %v216
        %v338 = vunpack.c.h.b16 %v216
        %v339 = vunpack.c.l.b16 %v217
        %v340 = vunpack.c.h.b16 %v217
        %v341 = vunpack.c.l.b16 %v218
        %v342 = vunpack.c.h.b16 %v218
        %v343 = vunpack.c.l.b16 %v219
        %v344 = vpack.c.b16 %v337, %v330
        %v345 = vpack.c.b16 %v338, %v331
        %v346 = vpack.c.b16 %v339, %v332
        %v347 = vpack.c.b16 %v340, %v333
        %v348 = vpack.c.b16 %v341, %v334
        %v349 = vpack.c.b16 %v342, %v335
        %v350 = vpack.c.b16 %v343, %v336
        %v455 = vunpack.c.l.b16 %v220
        %v456 = vunpack.c.l.b16 %v221
        %v457 = vunpack.c.l.b16 %v222
        %v458 = vunpack.c.l.b16 %v223
        %v459 = vunpack.c.l.b16 %v224
        %v460 = vunpack.c.l.b16 %v225
        %v461 = vunpack.c.l.b16 %v226
        %v462 = vunpack.c.l.b16 %v227
        %v463 = vunpack.c.l.b16 %v228
        %v464 = vunpack.c.l.b16 %v229
        %v465 = vunpack.c.l.b16 %v230
        %v466 = vunpack.c.l.b16 %v231
        %v467 = vunpack.c.l.b16 %v232
        %v468 = vunpack.c.l.b16 %v233
        %v469 = vunpack.c.l.b16 %v234
        %v470 = vunpack.c.l.b16 %v235
        %v471 = vunpack.c.l.b16 %v236
        %v472 = vunpack.c.l.b16 %v237
        %v473 = vunpack.c.l.b16 %v238
        %v474 = vunpack.c.l.b16 %v239
        %v475 = vunpack.c.l.b16 %v240
        %v476 = vunpack.c.l.b16 %v241
        %v477 = vunpack.c.l.b16 %v242
        %v478 = vunpack.c.l.b16 %v243
        %v479 = vunpack.c.l.b16 %v244
        %v480 = vunpack.c.l.b16 %v245
        %v481 = vunpack.c.l.b16 %v246
        %v482 = vunpack.c.l.b16 %v247
        %v483 = vunpack.c.l.b16 %v248
        %v484 = vunpack.c.l.b16 %v249
        %v485 = vunpack.c.l.b16 %v250
        %v486 = vunpack.c.l.b16 %v251
        %v487 = vunpack.c.l.b16 %v252
        %v488 = vunpack.c.l.b16 %v253
        %v489 = vunpack.c.l.b16 %v254
        %v490 = vunpack.c.l.b16 %v255
        %v491 = vunpack.c.l.b16 %v256
        %v492 = vunpack.c.l.b16 %v257
        %v493 = vunpack.c.l.b16 %v258
        %v494 = vunpack.c.l.b16 %v259
        %v495 = vunpack.c.l.b16 %v260
        %v496 = vunpack.c.l.b16 %v261
        %v497 = vunpack.c.l.b16 %v262
        %v498 = vunpack.c.l.b16 %v263
        %v499 = vunpack.c.l.b16 %v264
        %v500 = vunpack.c.l.b16 %v265
        %v501 = vunpack.c.l.b16 %v266
        %v502 = vunpack.c.l.b16 %v267
        %v503 = vunpack.c.l.b16 %v268
        %v504 = vunpack.c.l.b16 %v269
        %v505 = vunpack.c.l.b16 %v270
        %v506 = vunpack.c.l.b16 %v271
        %v507 = vunpack.c.l.b16 %v272
        %v508 = vunpack.c.l.b16 %v273
        %v509 = vunpack.c.l.b16 %v274
        %v510 = vunpack.c.l.b16 %v275
        %v511 = vunpack.c.l.b16 %v276
        %v512 = vunpack.c.l.b16 %v277
        %v513 = vunpack.c.l.b16 %v278
        %v514 = vunpack.c.l.b16 %v279
        %v515 = vunpack.c.l.b16 %v280
        %v516 = vunpack.c.l.b16 %v281
        %v517 = vunpack.c.l.b16 %v282
        %v518 = vunpack.c.l.b16 %v283
        %v519 = vunpack.c.l.b16 %v284
        %v520 = vunpack.c.l.b16 %v285
        %v521 = vunpack.c.l.b16 %v286
        %v522 = vunpack.c.l.b16 %v287
        %v523 = vunpack.c.l.b16 %v288
        %v524 = vunpack.c.l.b16 %v289
        %v525 = vunpack.c.l.b16 %v290
        %v526 = vunpack.c.l.b16 %v291
        %v527 = vunpack.c.l.b16 %v292
        %v528 = vunpack.c.l.b16 %v293
        %v529 = vunpack.c.l.b16 %v294
        %v530 = vunpack.c.l.b16 %v295
        %v531 = vunpack.c.l.b16 %v296
        %v532 = vunpack.c.l.b16 %v297
        %v533 = vunpack.c.l.b16 %v298
        %v534 = vunpack.c.l.b16 %v299
        %v535 = vunpack.c.l.b16 %v300
        %v536 = vunpack.c.l.b16 %v301
        %v537 = vunpack.c.l.b16 %v302
        %v538 = vunpack.c.l.b16 %v303
        %v539 = vunpack.c.l.b16 %v304
        %v540 = vunpack.c.l.b16 %v305
        %v541 = vunpack.c.l.b16 %v306
        %v542 = vunpack.c.l.b16 %v307
        %v543 = vunpack.c.l.b16 %v308
        %v544 = vunpack.c.l.b16 %v309
        %v545 = vunpack.c.l.b16 %v310
        %v546 = vunpack.c.l.b16 %v311
        %v547 = vunpack.c.l.b16 %v312
        %v548 = vunpack.c.l.b16 %v313
        %v549 = vunpack.c.l.b16 %v314
        %v550 = vunpack.c.l.b16 %v315
        %v551 = vunpack.c.l.b16 %v316
        %v552 = vunpack.c.l.b16 %v317
        %v553 = vpack.c.b16 %v456, %v455
        %v554 = vpack.c.b16 %v458, %v457
        %v555 = vpack.c.b16 %v460, %v459
        %v556 = vpack.c.b16 %v462, %v461
        %v557 = vpack.c.b16 %v464, %v463
        %v558 = vpack.c.b16 %v466, %v465
        %v559 = vpack.c.b16 %v468, %v467
        %v560 = vpack.c.b16 %v470, %v469
        %v561 = vpack.c.b16 %v472, %v471
        %v562 = vpack.c.b16 %v474, %v473
        %v563 = vpack.c.b16 %v476, %v475
        %v564 = vpack.c.b16 %v478, %v477
        %v565 = vpack.c.b16 %v480, %v479
        %v566 = vpack.c.b16 %v482, %v481
        %v567 = vpack.c.b16 %v484, %v483
        %v568 = vpack.c.b16 %v486, %v485
        %v569 = vpack.c.b16 %v488, %v487
        %v570 = vpack.c.b16 %v490, %v489
        %v571 = vpack.c.b16 %v492, %v491
        %v572 = vpack.c.b16 %v494, %v493
        %v573 = vpack.c.b16 %v496, %v495
        %v574 = vpack.c.b16 %v498, %v497
        %v575 = vpack.c.b16 %v500, %v499
        %v576 = vpack.c.b16 %v502, %v501
        %v577 = vpack.c.b16 %v504, %v503
        %v578 = vpack.c.b16 %v506, %v505
        %v579 = vpack.c.b16 %v508, %v507
        %v580 = vpack.c.b16 %v510, %v509
        %v581 = vpack.c.b16 %v512, %v511
        %v582 = vpack.c.b16 %v514, %v513
        %v583 = vpack.c.b16 %v516, %v515
        %v584 = vpack.c.b16 %v518, %v517
        %v585 = vpack.c.b16 %v520, %v519
        %v586 = vpack.c.b16 %v522, %v521
        %v587 = vpack.c.b16 %v524, %v523
        %v588 = vpack.c.b16 %v526, %v525
        %v589 = vpack.c.b16 %v528, %v527
        %v590 = vpack.c.b16 %v530, %v529
        %v591 = vpack.c.b16 %v532, %v531
        %v592 = vpack.c.b16 %v534, %v533
        %v593 = vpack.c.b16 %v536, %v535
        %v594 = vpack.c.b16 %v538, %v537
        %v595 = vpack.c.b16 %v540, %v539
        %v596 = vpack.c.b16 %v542, %v541
        %v597 = vpack.c.b16 %v544, %v543
        %v598 = vpack.c.b16 %v546, %v545
        %v599 = vpack.c.b16 %v548, %v547
        %v600 = vpack.c.b16 %v550, %v549
        %v601 = vpack.c.b16 %v552, %v551
        %vm651 = vcmask 130048
        %v653 = vsel %vm651, %v350, 0
        %655 = vmatpush.bf16.msra.mxu0 %v560
        %656 = vmatpush.bf16.msra.mxu0 %v559
        %657 = vmatpush.bf16.msra.mxu0 %v558
        %658 = vmatpush.bf16.msra.mxu0 %v557
        %659 = vmatpush.bf16.msra.mxu0 %v556
        %660 = vmatpush.bf16.msra.mxu0 %v555
        %661 = vmatpush.bf16.msra.mxu0 %v554
        %662 = vmatpush.bf16.msra.mxu0 %v553
        %663 = vmatmul.bf16.gmra.mxu0 %v344
        %v664 = vpop.f32.mrf.mxu0
        %v665 = vadd.f32 %v320, %v664
        %v666 = vpop.f32.mrf.mxu0
        %v667 = vadd.f32 %v320, %v666
        %668 = vdwg.mxu0
        %669 = vmatpush.bf16.msra.mxu0 %v568
        %670 = vmatpush.bf16.msra.mxu0 %v567
        %671 = vmatpush.bf16.msra.mxu0 %v566
        %672 = vmatpush.bf16.msra.mxu0 %v565
        %673 = vmatpush.bf16.msra.mxu0 %v564
        %674 = vmatpush.bf16.msra.mxu0 %v563
        %675 = vmatpush.bf16.msra.mxu0 %v562
        %676 = vmatpush.bf16.msra.mxu0 %v561
        %677 = vmatmul.bf16.gmra.mxu0 %v345
        %v678 = vpop.f32.mrf.mxu0
        %v679 = vadd.f32 %v665, %v678
        %v680 = vpop.f32.mrf.mxu0
        %v681 = vadd.f32 %v667, %v680
        %682 = vdwg.mxu0
        %683 = vmatpush.bf16.msra.mxu0 %v576
        %684 = vmatpush.bf16.msra.mxu0 %v575
        %685 = vmatpush.bf16.msra.mxu0 %v574
        %686 = vmatpush.bf16.msra.mxu0 %v573
        %687 = vmatpush.bf16.msra.mxu0 %v572
        %688 = vmatpush.bf16.msra.mxu0 %v571
        %689 = vmatpush.bf16.msra.mxu0 %v570
        %690 = vmatpush.bf16.msra.mxu0 %v569
        %691 = vmatmul.bf16.gmra.mxu0 %v346
        %v692 = vpop.f32.mrf.mxu0
        %v693 = vadd.f32 %v679, %v692
        %v694 = vpop.f32.mrf.mxu0
        %v695 = vadd.f32 %v681, %v694
        %696 = vdwg.mxu0
        %697 = vmatpush.bf16.msra.mxu0 %v584
        %698 = vmatpush.bf16.msra.mxu0 %v583
        %699 = vmatpush.bf16.msra.mxu0 %v582
        %700 = vmatpush.bf16.msra.mxu0 %v581
        %701 = vmatpush.bf16.msra.mxu0 %v580
        %702 = vmatpush.bf16.msra.mxu0 %v579
        %703 = vmatpush.bf16.msra.mxu0 %v578
        %704 = vmatpush.bf16.msra.mxu0 %v577
        %705 = vmatmul.bf16.gmra.mxu0 %v347
        %v706 = vpop.f32.mrf.mxu0
        %v707 = vadd.f32 %v693, %v706
        %v708 = vpop.f32.mrf.mxu0
        %v709 = vadd.f32 %v695, %v708
        %710 = vdwg.mxu0
        %711 = vmatpush.bf16.msra.mxu0 %v592
        %712 = vmatpush.bf16.msra.mxu0 %v591
        %713 = vmatpush.bf16.msra.mxu0 %v590
        %714 = vmatpush.bf16.msra.mxu0 %v589
        %715 = vmatpush.bf16.msra.mxu0 %v588
        %716 = vmatpush.bf16.msra.mxu0 %v587
        %717 = vmatpush.bf16.msra.mxu0 %v586
        %718 = vmatpush.bf16.msra.mxu0 %v585
        %719 = vmatmul.bf16.gmra.mxu0 %v348
        %v720 = vpop.f32.mrf.mxu0
        %v721 = vadd.f32 %v707, %v720
        %v722 = vpop.f32.mrf.mxu0
        %v723 = vadd.f32 %v709, %v722
        %724 = vdwg.mxu0
        %725 = vmatpush.bf16.msra.mxu0 %v600
        %726 = vmatpush.bf16.msra.mxu0 %v599
        %727 = vmatpush.bf16.msra.mxu0 %v598
        %728 = vmatpush.bf16.msra.mxu0 %v597
        %729 = vmatpush.bf16.msra.mxu0 %v596
        %730 = vmatpush.bf16.msra.mxu0 %v595
        %731 = vmatpush.bf16.msra.mxu0 %v594
        %732 = vmatpush.bf16.msra.mxu0 %v593
        %733 = vmatmul.bf16.gmra.mxu0 %v349
        %v734 = vpop.f32.mrf.mxu0
        %v735 = vadd.f32 %v721, %v734
        %v736 = vpop.f32.mrf.mxu0
        %v737 = vadd.f32 %v723, %v736
        %738 = vdwg.mxu0
        %739 = vmatpush.bf16.msra.mxu0 0
        %740 = vmatpush.bf16.msra.mxu0 0
        %741 = vmatpush.bf16.msra.mxu0 0
        %742 = vmatpush.bf16.msra.mxu0 0
        %743 = vmatpush.bf16.msra.mxu0 0
        %744 = vmatpush.bf16.msra.mxu0 0
        %745 = vmatpush.bf16.msra.mxu0 0
        %746 = vmatpush.bf16.msra.mxu0 %v601
        %747 = vmatmul.bf16.gmra.mxu0 %v653
        %v748 = vpop.f32.mrf.mxu0
        %v749 = vadd.f32 %v735, %v748
        %v750 = vpop.f32.mrf.mxu0
        %v751 = vadd.f32 %v737, %v750
        %752 = vdwg.mxu0
        %v753 = vpack.c.bf16 %v749, %v749
        %v754 = vpack.c.bf16 %v751, %v751
        %755 = vst [vmem:[%s208] sm:$0xf] %v753
        %756 = vst [vmem:[%s208 + $0x4] sm:$0xf] %v754
        %s757 = sand.u32 %s97, 1
        %s758 = scalar_lea.sflag [#allocation4], %s757
        %s759 = sand.u32 %s97, 1
        %s760 = smul.addr %s759, 8
        %s761 = scalar_lea.vmem [#allocation7], %s760
        // Predicated region
        $region41: #{tpu_custom_call.1} parent=31 // pred_check
          %p762 = pneg %p107
        $region42: #{tpu_custom_call.1} parent=31 // pred_check_branch
          %764 = sbr.rel (%p762) target = $region44
        $region43: #{tpu_custom_call.1} parent=31 // pred_region
          %s765 = smul.u32 2, %s21
          %767 = vsyncadd %s758, 0
          %s768 = smul.addr %s765, 4
          %s769 = scalar_lea.hbm %s3, %s768
          %s770 = sshll.u32 %s761, 4
          %s771 = int_to_ptr.vmem [resolvable:$true] %s770
          %s772 = sshll.u32 %s769, 4
          %s773 = int_to_ptr.hbm [resolvable:$true] %s772
          %778 = dma.vmem_to_hbm [thread:$0]  %s771, 128, %s773, %s758, 64, 64, 4
        $region44: #{tpu_custom_call.1} parent=31 // pred_fallthru
          _
      $region32: #{tpu_custom_call.1} parent=5 // pred_fallthru
        _
      %p779 = scmp.le.s32.totalorder 2, %s16
      // Predicated region
      $region45: #{tpu_custom_call.1} parent=5 // pred_check
        %p780 = pneg %p779
      $region46: #{tpu_custom_call.1} parent=5 // pred_check_branch
        %782 = sbr.rel (%p780) target = $region48
      $region47: #{tpu_custom_call.1} parent=5 // pred_region
        %s783 = ssub.s32 %s16, 2
        // Predicated region
        $region49: #{tpu_custom_call.1} parent=47 // pred_check
          %p784 = pneg %p113
        $region50: #{tpu_custom_call.1} parent=47 // pred_check_branch
          %786 = sbr.rel (%p784) target = $region52
        $region51: #{tpu_custom_call.1} parent=47 // pred_region
          %s787 = sand.u32 %s98, 1
          %s788 = scalar_lea.sflag [#allocation4], %s787
          %s789 = sand.u32 %s98, 1
          %s790 = smul.addr %s789, 8
          %s791 = scalar_lea.vmem [#allocation7], %s790
          %793 = dma.done %s788, 128
        $region52: #{tpu_custom_call.1} parent=47 // pred_fallthru
          _
      $region48: #{tpu_custom_call.1} parent=5 // pred_fallthru
        _
    $region6: #{tpu_custom_call.1} parent=1 // loop_footer
      %s20 = sadd.s32 1, %s16
    $region7: #{tpu_custom_call.1} parent=1 // loop_footer_branch
      %15 = sbr.rel target = $region3
    $region8: #{tpu_custom_call.1} parent=1 // loop_exit
      _
    %794 = vsyncpa [#allocation3], 1
    %s795 = scalar_lea.sflag [#allocation3], 1
    %796 = vsyncpa %s795, 1
    %797 = vsyncpa [#allocation6], 1
    %798 = vsyncpa [#allocation4], 1
    %s799 = scalar_lea.sflag [#allocation4], 1
    %800 = vsyncpa %s799, 1

</llo_original>
